<compile_context>
chip_gen: v5e
topology: v5e:2x2
jax: 0.10.0
libtpu: 0.0.40
codegen_flags: <defaults>
</compile_context>

<pallas_src>
import jax
import jax.numpy as jnp
from jax import lax
from jax.experimental import pallas as pl
from jax.experimental.pallas import tpu as pltpu


_MAX_TILE_N = 1024   # rows per grid step
_MAX_TILE_C = 2048   # classes per grid step (online-logsumexp block)


def _round_up(x, m):
    return ((x + m - 1) // m) * m


def _vmem_capacity_bytes():
    """Generation-aware VMEM capacity (v5e/v6e: 128 MiB, v7x: 64 MiB)."""
    try:
        info = pltpu.get_tpu_info()
        cap = getattr(info, "vmem_capacity_bytes", None)
        if cap:
            return int(cap)
    except Exception:
        pass
    return 64 * 1024 * 1024  # conservative (v7x) fallback


def _choose_tiles(N, C, itemsize):
    vmem_cap = _vmem_capacity_bytes()
    # Leave headroom under physical capacity for compiler-internal scratch.
    vmem_limit = int(vmem_cap * 3 // 4)
    # The double-buffered logits block dominates VMEM use; give it half.
    logits_budget = vmem_limit // 2
    tile_c = C if C <= _MAX_TILE_C else _MAX_TILE_C
    max_rows = max(8, logits_budget // (2 * tile_c * itemsize))
    tile_n = min(_MAX_TILE_N, (max_rows // 8) * 8, _round_up(N, 8))
    tile_n = max(8, tile_n)
    return tile_n, tile_c, vmem_limit


def _make_ce_kernel(*, N, C, tile_n, tile_c, has_weight, reduce_out):
    mask_cols = (C % tile_c) != 0   # last class tile is partial
    mask_rows = (N % tile_n) != 0   # last row tile is partial

    def kernel(*refs):
        it = iter(refs)
        logits_ref = next(it)
        target_ref = next(it)
        tgtw_ref = next(it) if has_weight else None
        loss_out_ref = next(it)
        wsum_out_ref = next(it) if reduce_out else None
        m_sc = next(it)   # running max           (tile_n, 1) f32
        l_sc = next(it)   # running sum(exp)      (tile_n, 1) f32
        t_sc = next(it)   # target-logit accum    (tile_n, 1) f32

        i = pl.program_id(0)   # row-tile index   ('parallel')
        k = pl.program_id(1)   # class-tile index ('arbitrary', reduction)

        @pl.when(k == 0)
        def _init():
            m_sc[...] = jnp.full_like(m_sc, -jnp.inf)
            l_sc[...] = jnp.zeros_like(l_sc)
            t_sc[...] = jnp.zeros_like(t_sc)

        x = logits_ref[...].astype(jnp.float32)                 # (tile_n, tile_c)
        tgt = target_ref[...]                                   # (tile_n, 1) int32

        # Global class index for each lane of this class tile, as a single
        # (1, tile_c) row; broadcasting against (tile_n, 1) / (tile_n, tile_c)
        # happens inside the compares (no full-tile iota vregs).
        cls = lax.broadcasted_iota(jnp.int32, (1, tile_c), 1) + k * tile_c
        if mask_cols:
            # Padded class columns of the last class tile must not contribute.
            x = jnp.where(cls < C, x, jnp.float32(-1e30))

        # ---- online logsumexp over the class axis ----
        m_prev = m_sc[...]
        m_new = jnp.maximum(m_prev, jnp.max(x, axis=-1, keepdims=True))
        l_sc[...] = l_sc[...] * jnp.exp(m_prev - m_new) + jnp.sum(
            jnp.exp(x - m_new), axis=-1, keepdims=True)
        m_sc[...] = m_new

        # ---- accumulate the target logit (one-hot select, no lane gather) ----
        t_sc[...] = t_sc[...] + jnp.sum(
            jnp.where(cls == tgt, x, 0.0), axis=-1, keepdims=True)

        @pl.when(k == pl.num_programs(1) - 1)
        def _finalize():
            lse = jnp.log(l_sc[...]) + m_sc[...]                # (tile_n, 1)
            # ignore_index-style semantics: out-of-range targets contribute 0
            # to the loss and to the 'mean' denominator.
            valid = (tgt >= 0) & (tgt < C)
            if mask_rows:
                row = lax.broadcasted_iota(jnp.int32, (tile_n, 1), 0) + i * tile_n
                valid = valid & (row < N)
            if has_weight:
                w = tgtw_ref[...]                               # (tile_n, 1) f32
            else:
                w = jnp.ones((tile_n, 1), jnp.float32)
            w = jnp.where(valid, w, 0.0)
            loss = jnp.where(valid, lse - t_sc[...], 0.0) * w   # (tile_n, 1)

            if reduce_out:
                # In-kernel row-tile reduction: one tiny lane-dense block per
                # row tile; final combine over row tiles happens in the wrapper
                # (keeps the row axis megacore-shardable).
                loss_out_ref[...] = jnp.broadcast_to(
                    jnp.sum(loss, keepdims=True), (1, 8, 128))
                wsum_out_ref[...] = jnp.broadcast_to(
                    jnp.sum(w, keepdims=True), (1, 8, 128))
            else:
                loss_out_ref[...] = loss

    return kernel


def cross_entropy(logits, target, weight=None, reduction="mean",
                  tile_n=None, tile_c=None):
    """Matches torch.nn.functional.cross_entropy for 2-D logits (N, C)."""
    if reduction not in ("mean", "sum", "none"):
        raise ValueError(f"unknown reduction: {reduction}")
    N, C = logits.shape
    itemsize = jnp.dtype(logits.dtype).itemsize

    auto_tn, auto_tc, vmem_limit = _choose_tiles(N, C, itemsize)
    tile_n = auto_tn if tile_n is None else tile_n
    tile_c = auto_tc if tile_c is None else tile_c
    assert tile_n % 8 == 0, "tile_n must be a multiple of 8"
    assert tile_c == C or tile_c % 128 == 0, "tile_c must be C or a multiple of 128"

    grid_rows = pl.cdiv(N, tile_n)
    grid_cols = pl.cdiv(C, tile_c)

    target2d = target.astype(jnp.int32).reshape(N, 1)
    has_weight = weight is not None
    reduce_out = reduction in ("mean", "sum")

    inputs = [logits, target2d]
    in_specs = [
        pl.BlockSpec((tile_n, tile_c), lambda i, k: (i, k)),   # logits tile
        pl.BlockSpec((tile_n, 1), lambda i, k: (i, 0)),        # targets (resident over k)
    ]
    if has_weight:
        # Gather w[target] once in the wrapper (N floats) instead of a per-tile
        # (tile_n, C) multiply + cross-lane reduce inside the kernel.
        t32 = target.astype(jnp.int32)
        tgt_w = jnp.take(weight.astype(jnp.float32),
                         jnp.clip(t32, 0, C - 1)).reshape(N, 1)
        inputs.append(tgt_w)
        in_specs.append(pl.BlockSpec((tile_n, 1), lambda i, k: (i, 0)))

    if reduce_out:
        out_shape = (
            jax.ShapeDtypeStruct((grid_rows, 8, 128), jnp.float32),  # sum(loss) per row tile
            jax.ShapeDtypeStruct((grid_rows, 8, 128), jnp.float32),  # sum(w)    per row tile
        )
        out_specs = (
            pl.BlockSpec((1, 8, 128), lambda i, k: (i, 0, 0)),
            pl.BlockSpec((1, 8, 128), lambda i, k: (i, 0, 0)),
        )
    else:
        out_shape = jax.ShapeDtypeStruct((N, 1), jnp.float32)
        out_specs = pl.BlockSpec((tile_n, 1), lambda i, k: (i, 0))

    kernel = _make_ce_kernel(N=N, C=C, tile_n=tile_n, tile_c=tile_c,
                             has_weight=has_weight, reduce_out=reduce_out)

    result = pl.pallas_call(
        kernel,
        out_shape=out_shape,
        grid_spec=pltpu.PrefetchScalarGridSpec(
            num_scalar_prefetch=0,
            grid=(grid_rows, grid_cols),
            in_specs=in_specs,
            out_specs=out_specs,
            scratch_shapes=[
                pltpu.VMEM((tile_n, 1), jnp.float32),   # running max
                pltpu.VMEM((tile_n, 1), jnp.float32),   # running sum(exp)
                pltpu.VMEM((tile_n, 1), jnp.float32),   # target logit accum
            ],
        ),
        compiler_params=pltpu.CompilerParams(
            # rows fully independent -> 'parallel' (v7x dual-TC sharding);
            # class axis is the online-softmax reduction -> 'arbitrary'.
            dimension_semantics=("parallel", "arbitrary"),
            vmem_limit_bytes=vmem_limit,
        ),
    )(*inputs)

    if reduction == "mean":
        loss_part, wsum_part = result
        # PyTorch divides by the sum of the (non-ignored) target-class weights.
        return jnp.sum(loss_part[:, 0, 0]) / jnp.sum(wsum_part[:, 0, 0])
    if reduction == "sum":
        loss_part, _ = result
        return jnp.sum(loss_part[:, 0, 0])
    return result[:, 0]   # 'none'


class CrossEntropy:
    """Drop-in equivalent of the reference nn.Module's forward()."""

    def __call__(self, input, target, weight=None, reduction="mean"):
        return cross_entropy(input, target, weight=weight, reduction=reduction)


def _ref_cross_entropy(logits, target, weight=None, reduction="mean"):
    x = logits.astype(jnp.float32)
    logp = x - jax.nn.logsumexp(x, axis=-1, keepdims=True)
    N, C = x.shape
    w = jnp.ones((C,), jnp.float32) if weight is None else weight.astype(jnp.float32)
    t = target.astype(jnp.int32)
    tgt_logp = jnp.take_along_axis(logp, t[:, None], axis=-1)[:, 0]
    tgt_w = w[t]
    per = -tgt_w * tgt_logp
    if reduction == "mean":
        return jnp.sum(per) / jnp.sum(tgt_w)
    if reduction == "sum":
        return jnp.sum(per)
    return per


if __name__ == "__main__":
    key = jax.random.PRNGKey(0)
    k1, k2, k3 = jax.random.split(key, 3)

    # Small default config (single row tile, single class tile).
    N, C = 16, 32
    logits = jax.random.normal(k1, (N, C), dtype=jnp.float32)
    target = jax.random.randint(k2, (N,), 0, C, dtype=jnp.int32)
    class_weight = jax.random.uniform(k3, (C,), dtype=jnp.float32) + 0.5

    ce = CrossEntropy()

    loss = ce(logits, target)                      # weight=None, 'mean'
    jax.block_until_ready(loss)
    ref = _ref_cross_entropy(logits, target)
    assert jnp.allclose(loss, ref, atol=1e-4, rtol=1e-4), (loss, ref)

    loss_w = ce(logits, target, weight=class_weight, reduction="sum")
    jax.block_until_ready(loss_w)
    ref_w = _ref_cross_entropy(logits, target, weight=class_weight, reduction="sum")
    assert jnp.allclose(loss_w, ref_w, atol=1e-4, rtol=1e-4), (loss_w, ref_w)

    loss_n = ce(logits, target, reduction="none")
    jax.block_until_ready(loss_n)
    ref_n = _ref_cross_entropy(logits, target, reduction="none")
    assert jnp.allclose(loss_n, ref_n, atol=1e-4, rtol=1e-4)

    # Exercise the tiled online-logsumexp path and the tail masking:
    # N and C are NOT divisible by the tiles.
    N2, C2 = 20, 160
    l2 = jax.random.normal(k1, (N2, C2), dtype=jnp.float32)
    t2 = jax.random.randint(k2, (N2,), 0, C2, dtype=jnp.int32)
    w2 = jax.random.uniform(k3, (C2,), dtype=jnp.float32) + 0.5
    for red in ("mean", "sum", "none"):
        got = cross_entropy(l2, t2, weight=w2, reduction=red, tile_n=8, tile_c=128)
        jax.block_until_ready(got)
        want = _ref_cross_entropy(l2, t2, weight=w2, reduction=red)
        assert jnp.allclose(got, want, atol=1e-4, rtol=1e-4), (red, got, want)
        got_u = cross_entropy(l2, t2, reduction=red, tile_n=8, tile_c=128)
        jax.block_until_ready(got_u)
        want_u = _ref_cross_entropy(l2, t2, reduction=red)
        assert jnp.allclose(got_u, want_u, atol=1e-4, rtol=1e-4), (red, got_u, want_u)

    # bf16 logits path (upcast happens inside the kernel, not in the wrapper).
    l3 = jax.random.normal(k1, (24, 384), dtype=jnp.bfloat16)
    t3 = jax.random.randint(k2, (24,), 0, 384, dtype=jnp.int32)
    got_b = cross_entropy(l3, t3, reduction="mean", tile_n=8, tile_c=128)
    jax.block_until_ready(got_b)
    want_b = _ref_cross_entropy(l3, t3, reduction="mean")
    assert jnp.allclose(got_b, want_b, atol=2e-2, rtol=2e-2), (got_b, want_b)

    print("KERNEL_OK")
</pallas_src>

<mosaic_0001>
module attributes {stable_mosaic.version = 11 : i64} {
  func.func @kernel(%arg0: i32, %arg1: i32, %arg2: memref<16x32xf32, #tpu.memory_space<vmem>>, %arg3: memref<16x1xi32, #tpu.memory_space<vmem>>, %arg4: memref<1x8x128xf32, #tpu.memory_space<vmem>>, %arg5: memref<1x8x128xf32, #tpu.memory_space<vmem>>, %arg6: memref<16x1xf32, #tpu.memory_space<vmem>>, %arg7: memref<16x1xf32, #tpu.memory_space<vmem>>, %arg8: memref<16x1xf32, #tpu.memory_space<vmem>>) attributes {dimension_semantics = [#tpu.dimension_semantics<parallel>, #tpu.dimension_semantics<arbitrary>], iteration_bounds = array<i64: 1, 1>, scalar_prefetch = 0 : i64, scratch_operands = 3 : i64, tpu.core_type = #tpu.core_type<tc>, window_params = [{transform_indices = @transform_0, window_bounds = array<i64: 16, 32>}, {transform_indices = @transform_1, window_bounds = array<i64: 16, 1>}, {transform_indices = @transform_2, window_bounds = array<i64: 1, 8, 128>}, {transform_indices = @transform_3, window_bounds = array<i64: 1, 8, 128>}]} {
    %c0_i32 = arith.constant 0 : i32
    %0 = arith.cmpi eq, %arg1, %c0_i32 : i32
    %1 = arith.extui %0 : i1 to i32
    %c0_i32_0 = arith.constant 0 : i32
    %2 = arith.cmpi ne, %1, %c0_i32_0 : i32
    scf.if %2 {
      %cst_21 = arith.constant 0xFF800000 : f32
      %38 = vector.broadcast %cst_21 : f32 to vector<16x1xf32>
      %c0_22 = arith.constant 0 : index
      %c0_23 = arith.constant 0 : index
      %39 = vector.load %arg6[%c0_22, %c0_23] : memref<16x1xf32, #tpu.memory_space<vmem>>, vector<16x1xf32>
      tpu.vector_store %arg6[%c0_22, %c0_23], %38 {strides = array<i32>} : memref<16x1xf32, #tpu.memory_space<vmem>>, vector<16x1xf32>,
      %cst_24 = arith.constant 0.000000e+00 : f32
      %40 = vector.broadcast %cst_24 : f32 to vector<16x1xf32>
      %c0_25 = arith.constant 0 : index
      %c0_26 = arith.constant 0 : index
      %41 = vector.load %arg7[%c0_25, %c0_26] : memref<16x1xf32, #tpu.memory_space<vmem>>, vector<16x1xf32>
      tpu.vector_store %arg7[%c0_25, %c0_26], %40 {strides = array<i32>} : memref<16x1xf32, #tpu.memory_space<vmem>>, vector<16x1xf32>,
      %cst_27 = arith.constant 0.000000e+00 : f32
      %42 = vector.broadcast %cst_27 : f32 to vector<16x1xf32>
      %c0_28 = arith.constant 0 : index
      %c0_29 = arith.constant 0 : index
      %43 = vector.load %arg8[%c0_28, %c0_29] : memref<16x1xf32, #tpu.memory_space<vmem>>, vector<16x1xf32>
      tpu.vector_store %arg8[%c0_28, %c0_29], %42 {strides = array<i32>} : memref<16x1xf32, #tpu.memory_space<vmem>>, vector<16x1xf32>,
    } else {
    }
    %c0 = arith.constant 0 : index
    %c0_1 = arith.constant 0 : index
    %3 = vector.load %arg2[%c0, %c0_1] : memref<16x32xf32, #tpu.memory_space<vmem>>, vector<16x32xf32>
    %c0_2 = arith.constant 0 : index
    %c0_3 = arith.constant 0 : index
    %4 = vector.load %arg3[%c0_2, %c0_3] : memref<16x1xi32, #tpu.memory_space<vmem>>, vector<16x1xi32>
    %5 = tpu.iota {dimensions = array<i32: 1>} : vector<1x32xi32>
    %c32_i32 = arith.constant 32 : i32
    %6 = arith.muli %arg1, %c32_i32 : i32
    %7 = vector.broadcast %6 : i32 to vector<1x32xi32>
    %8 = arith.addi %5, %7 : vector<1x32xi32>
    %c0_4 = arith.constant 0 : index
    %c0_5 = arith.constant 0 : index
    %9 = vector.load %arg6[%c0_4, %c0_5] : memref<16x1xf32, #tpu.memory_space<vmem>>, vector<16x1xf32>
    %cst = arith.constant dense<0xFF800000> : vector<16xf32>
    %10 = vector.multi_reduction <maximumf>, %3, %cst [1] : vector<16x32xf32> to vector<16xf32>
    %11 = vector.shape_cast %10 : vector<16xf32> to vector<16x1xf32>
    %12 = arith.maximumf %9, %11 : vector<16x1xf32>
    %c0_6 = arith.constant 0 : index
    %c0_7 = arith.constant 0 : index
    %13 = vector.load %arg7[%c0_6, %c0_7] : memref<16x1xf32, #tpu.memory_space<vmem>>, vector<16x1xf32>
    %14 = arith.subf %9, %12 : vector<16x1xf32>
    %15 = math.exp %14 : vector<16x1xf32>
    %16 = arith.mulf %13, %15 : vector<16x1xf32>
    %17 = vector.broadcast %12 : vector<16x1xf32> to vector<16x32xf32>
    %18 = arith.subf %3, %17 : vector<16x32xf32>
    %19 = math.exp %18 : vector<16x32xf32>
    %cst_8 = arith.constant dense<0.000000e+00> : vector<16xf32>
    %20 = vector.multi_reduction <add>, %19, %cst_8 [1] : vector<16x32xf32> to vector<16xf32>
    %21 = vector.shape_cast %20 : vector<16xf32> to vector<16x1xf32>
    %22 = arith.addf %16, %21 : vector<16x1xf32>
    %c0_9 = arith.constant 0 : index
    %c0_10 = arith.constant 0 : index
    %23 = vector.load %arg7[%c0_9, %c0_10] : memref<16x1xf32, #tpu.memory_space<vmem>>, vector<16x1xf32>
    tpu.vector_store %arg7[%c0_9, %c0_10], %22 {strides = array<i32>} : memref<16x1xf32, #tpu.memory_space<vmem>>, vector<16x1xf32>,
    %c0_11 = arith.constant 0 : index
    %c0_12 = arith.constant 0 : index
    %24 = vector.load %arg6[%c0_11, %c0_12] : memref<16x1xf32, #tpu.memory_space<vmem>>, vector<16x1xf32>
    tpu.vector_store %arg6[%c0_11, %c0_12], %12 {strides = array<i32>} : memref<16x1xf32, #tpu.memory_space<vmem>>, vector<16x1xf32>,
    %c0_13 = arith.constant 0 : index
    %c0_14 = arith.constant 0 : index
    %25 = vector.load %arg8[%c0_13, %c0_14] : memref<16x1xf32, #tpu.memory_space<vmem>>, vector<16x1xf32>
    %26 = vector.broadcast %8 : vector<1x32xi32> to vector<16x32xi32>
    %27 = vector.broadcast %4 : vector<16x1xi32> to vector<16x32xi32>
    %28 = arith.cmpi eq, %26, %27 : vector<16x32xi32>
    %cst_15 = arith.constant 0.000000e+00 : f32
    %29 = vector.broadcast %cst_15 : f32 to vector<16x32xf32>
    %30 = arith.select %28, %3, %29 : vector<16x32xi1>, vector<16x32xf32>
    %cst_16 = arith.constant dense<0.000000e+00> : vector<16xf32>
    %31 = vector.multi_reduction <add>, %30, %cst_16 [1] : vector<16x32xf32> to vector<16xf32>
    %32 = vector.shape_cast %31 : vector<16xf32> to vector<16x1xf32>
    %33 = arith.addf %25, %32 : vector<16x1xf32>
    %c0_17 = arith.constant 0 : index
    %c0_18 = arith.constant 0 : index
    %34 = vector.load %arg8[%c0_17, %c0_18] : memref<16x1xf32, #tpu.memory_space<vmem>>, vector<16x1xf32>
    tpu.vector_store %arg8[%c0_17, %c0_18], %33 {strides = array<i32>} : memref<16x1xf32, #tpu.memory_space<vmem>>, vector<16x1xf32>,
    %c0_i32_19 = arith.constant 0 : i32
    %35 = arith.cmpi eq, %arg1, %c0_i32_19 : i32
    %36 = arith.extui %35 : i1 to i32
    %c0_i32_20 = arith.constant 0 : i32
    %37 = arith.cmpi ne, %36, %c0_i32_20 : i32
    scf.if %37 {
      %c0_21 = arith.constant 0 : index
      %c0_22 = arith.constant 0 : index
      %38 = vector.load %arg7[%c0_21, %c0_22] : memref<16x1xf32, #tpu.memory_space<vmem>>, vector<16x1xf32>
      %39 = math.log %38 : vector<16x1xf32>
      %c0_23 = arith.constant 0 : index
      %c0_24 = arith.constant 0 : index
      %40 = vector.load %arg6[%c0_23, %c0_24] : memref<16x1xf32, #tpu.memory_space<vmem>>, vector<16x1xf32>
      %41 = arith.addf %39, %40 : vector<16x1xf32>
      %c0_i32_25 = arith.constant 0 : i32
      %42 = vector.broadcast %c0_i32_25 : i32 to vector<16x1xi32>
      %43 = arith.cmpi sge, %4, %42 : vector<16x1xi32>
      %c32_i32_26 = arith.constant 32 : i32
      %44 = vector.broadcast %c32_i32_26 : i32 to vector<16x1xi32>
      %45 = arith.cmpi slt, %4, %44 : vector<16x1xi32>
      %46 = arith.andi %43, %45 : vector<16x1xi1>
      %cst_27 = arith.constant 1.000000e+00 : f32
      %47 = vector.broadcast %cst_27 : f32 to vector<16x1xf32>
      %cst_28 = arith.constant 0.000000e+00 : f32
      %48 = vector.broadcast %cst_28 : f32 to vector<16x1xf32>
      %49 = arith.select %46, %47, %48 : vector<16x1xi1>, vector<16x1xf32>
      %c0_29 = arith.constant 0 : index
      %c0_30 = arith.constant 0 : index
      %50 = vector.load %arg8[%c0_29, %c0_30] : memref<16x1xf32, #tpu.memory_space<vmem>>, vector<16x1xf32>
      %51 = arith.subf %41, %50 : vector<16x1xf32>
      %cst_31 = arith.constant 0.000000e+00 : f32
      %52 = vector.broadcast %cst_31 : f32 to vector<16x1xf32>
      %53 = arith.select %46, %51, %52 : vector<16x1xi1>, vector<16x1xf32>
      %54 = arith.mulf %53, %49 : vector<16x1xf32>
      %55 = vector.shape_cast %54 : vector<16x1xf32> to vector<1x16x1xf32>
      %cst_32 = arith.constant dense<0.000000e+00> : vector<1xf32>
      %56 = vector.multi_reduction <add>, %55, %cst_32 [1, 2] : vector<1x16x1xf32> to vector<1xf32>
      %57 = vector.shape_cast %56 : vector<1xf32> to vector<1x1x1xf32>
      %58 = vector.extract %57[0, 0, 0] : f32 from vector<1x1x1xf32>
      %59 = vector.broadcast %58 : f32 to vector<1x1xf32>
      %60 = vector.shape_cast %59 : vector<1x1xf32> to vector<1x1x1xf32>
      %61 = vector.broadcast %60 : vector<1x1x1xf32> to vector<1x8x128xf32>
      %c0_33 = arith.constant 0 : index
      %c0_34 = arith.constant 0 : index
      %c0_35 = arith.constant 0 : index
      %62 = vector.load %arg4[%c0_33, %c0_34, %c0_35] : memref<1x8x128xf32, #tpu.memory_space<vmem>>, vector<1x8x128xf32>
      tpu.vector_store %arg4[%c0_33, %c0_34, %c0_35], %61 {strides = array<i32>} : memref<1x8x128xf32, #tpu.memory_space<vmem>>, vector<1x8x128xf32>,
      %63 = vector.shape_cast %49 : vector<16x1xf32> to vector<1x16x1xf32>
      %cst_36 = arith.constant dense<0.000000e+00> : vector<1xf32>
      %64 = vector.multi_reduction <add>, %63, %cst_36 [1, 2] : vector<1x16x1xf32> to vector<1xf32>
      %65 = vector.shape_cast %64 : vector<1xf32> to vector<1x1x1xf32>
      %66 = vector.extract %65[0, 0, 0] : f32 from vector<1x1x1xf32>
      %67 = vector.broadcast %66 : f32 to vector<1x1xf32>
      %68 = vector.shape_cast %67 : vector<1x1xf32> to vector<1x1x1xf32>
      %69 = vector.broadcast %68 : vector<1x1x1xf32> to vector<1x8x128xf32>
      %c0_37 = arith.constant 0 : index
      %c0_38 = arith.constant 0 : index
      %c0_39 = arith.constant 0 : index
      %70 = vector.load %arg5[%c0_37, %c0_38, %c0_39] : memref<1x8x128xf32, #tpu.memory_space<vmem>>, vector<1x8x128xf32>
      tpu.vector_store %arg5[%c0_37, %c0_38, %c0_39], %69 {strides = array<i32>} : memref<1x8x128xf32, #tpu.memory_space<vmem>>, vector<1x8x128xf32>,
    } else {
    }
    return
  }
  func.func @transform_0(%arg0: i32, %arg1: i32) -> (i32, i32) {
    %c0_i32 = arith.constant 0 : i32
    return %arg0, %arg1 : i32, i32
  }
  func.func @transform_1(%arg0: i32, %arg1: i32) -> (i32, i32) {
    %c0_i32 = arith.constant 0 : i32
    %c0_i32_0 = arith.constant 0 : i32
    return %arg0, %c0_i32 : i32, i32
  }
  func.func @transform_2(%arg0: i32, %arg1: i32) -> (i32, i32, i32) {
    %c0_i32 = arith.constant 0 : i32
    %c0_i32_0 = arith.constant 0 : i32
    %c0_i32_1 = arith.constant 0 : i32
    return %arg0, %c0_i32, %c0_i32_0 : i32, i32, i32
  }
  func.func @transform_3(%arg0: i32, %arg1: i32) -> (i32, i32, i32) {
    %c0_i32 = arith.constant 0 : i32
    %c0_i32_0 = arith.constant 0 : i32
    %c0_i32_1 = arith.constant 0 : i32
    return %arg0, %c0_i32, %c0_i32_0 : i32, i32, i32
  }
}

</mosaic_0001>

<llo_original>
// kernel: tpu_custom_call.1
$region0: #{tpu_custom_call.1}
  #allocation0 [shape = 'u32[]', space=smem, size = 0x4, offset = 0x4, fixed_abs, tag = 'smem constant byte address 0x4 - core index']
  #allocation1 [shape = 'u32[72,128]{1,0:T(1,128)}', space=vmem, size = 0x9000, scoped, tag = 'internal scratch']
  #allocation2 [shape = 'f32[16,1]{1,0:T(8,128)}', space=vmem, size = 0x2000, scoped, tag = 'scratch operand']
  #allocation3 [shape = 'f32[16,1]{1,0:T(8,128)}', space=vmem, size = 0x2000, scoped, tag = 'scratch operand']
  #allocation4 [shape = 'f32[16,1]{1,0:T(8,128)}', space=vmem, size = 0x2000, scoped, tag = 'scratch operand']
  %s0 = inlined_call_operand.vmem [shape: f32[16,32], index: 0, kind: input, shape index: {}]
  %s1 = inlined_call_operand.vmem [shape: s32[16,1], index: 1, kind: input, shape index: {}]
  %s2 = inlined_call_operand.hbm [shape: f32[1,8,128], index: 2, kind: output, shape index: {0}]
  %s3 = inlined_call_operand.hbm [shape: f32[1,8,128], index: 3, kind: output, shape index: {1}]
  %4 = xla_tuple %s2, %s3
  %s5 = sld [smem:[#allocation0]]
  $region34: #{tpu_custom_call.1} parent=0
    _
  %s7 = ssub.s32 1, %s5
  %s8 = scalar_select 0, %s7, %s5
  $region1: #{tpu_custom_call.1} parent=0
    #allocation5 [shape = 'u8[4096]{0}', space=vmem, size = 0x1000, scoped, tag = 'output window, operand 0, single buffered']
    #allocation6 [shape = 's32[1]{0}', space=sflag, size = 0x4, scoped, tag = 'scoped memory for tpu_custom_call.1']
    #allocation7 [shape = 'u8[4096]{0}', space=vmem, size = 0x1000, scoped, tag = 'output window, operand 1, single buffered']
    #allocation8 [shape = 's32[1]{0}', space=sflag, size = 0x4, scoped, tag = 'scoped memory for tpu_custom_call.1']
    %9 = vsyncpa [#allocation6], 0
    %10 = vsyncpa [#allocation8], 0
    // Predicated region
    $region2: #{tpu_custom_call.1} parent=1 // pred_check
      _
    $region3: #{tpu_custom_call.1} parent=1 // pred_check_branch
      %12 = sbr.rel (0) target = $region5
    $region4: #{tpu_custom_call.1} parent=1 // pred_region
      _
    $region5: #{tpu_custom_call.1} parent=1 // pred_fallthru
      _
    // Predicated region
    $region6: #{tpu_custom_call.1} parent=1 // pred_check
      _
    $region7: #{tpu_custom_call.1} parent=1 // pred_check_branch
      %14 = sbr.rel (0) target = $region9
    $region8: #{tpu_custom_call.1} parent=1 // pred_region
      _
    $region9: #{tpu_custom_call.1} parent=1 // pred_fallthru
      _
    %p15 = scmp.eq.s32.totalorder 0, 0
    // Predicated region
    $region10: #{tpu_custom_call.1} parent=1 // pred_check
      %p16 = pneg %p15
    $region11: #{tpu_custom_call.1} parent=1 // pred_check_branch
      %18 = sbr.rel (%p16) target = $region13
    $region12: #{tpu_custom_call.1} parent=1 // pred_region
      %vm19 = vcmask 7168
      %20 = vst.msk [vmem:[#allocation2] sm:$0xff] %vm19, -inf
      %21 = vst.msk [vmem:[#allocation2 + $0x8] sm:$0xff] %vm19, -inf
      %22 = vst.msk [vmem:[#allocation3] sm:$0xff] %vm19, 0.0
      %23 = vst.msk [vmem:[#allocation3 + $0x8] sm:$0xff] %vm19, 0.0
      %24 = vst.msk [vmem:[#allocation4] sm:$0xff] %vm19, 0.0
      %25 = vst.msk [vmem:[#allocation4 + $0x8] sm:$0xff] %vm19, 0.0
    $region13: #{tpu_custom_call.1} parent=1 // pred_fallthru
      _
    %v26 = vld [vmem:[%s0] sm:$0xff]
    %v27 = vld [vmem:[%s0 + $0x8] sm:$0xff]
    %v28 = vld [vmem:[%s1] sm:$0xff]
    %v29 = vld [vmem:[%s1 + $0x8] sm:$0xff]
    %v30 = vlaneseq
    %v31 = vand.u32 %v30, 127
    %s32 = smul.u32 0, 32
    %v33 = vstv %s32
    %v34 = vadd.s32 %v31, %v33
    %v35 = vld [vmem:[#allocation2] sm:$0xff]
    %v36 = vld [vmem:[#allocation2 + $0x8] sm:$0xff]
    %vm37 = vcmask 261120
    %v38 = vsel %vm37, %v26, -inf
    %39 = vmax.xlane.f32.xlu0 %v38
    %v40 = vpop.xlane.xlu0 %39
    %v41 = vsel %vm37, %v27, -inf
    %42 = vmax.xlane.f32.xlu0 %v41
    %v43 = vpop.xlane.xlu0 %42
    %v44 = vmax.f32 %v35, %v40
    %v45 = vmax.f32 %v36, %v43
    %v46 = vld [vmem:[#allocation3] sm:$0xff]
    %v47 = vld [vmem:[#allocation3 + $0x8] sm:$0xff]
    %v48 = vsub.f32 %v35, %v44
    %v49 = vsub.f32 %v36, %v45
    %v50 = vmul.f32 %v48, 1.442695
    %v51 = vpow.pop %v50
    %v52 = vmul.f32 %v49, 1.442695
    %v53 = vpow.pop %v52
    %v54 = vmul.f32 %v46, %v51
    %v55 = vmul.f32 %v47, %v53
    %57 = vset.pattern.permute.xlu0 0
    %58 = vperm.xlu0 %57, %v44
    %v59 = vpop.permute.xlu0 %58
    %62 = vset.pattern.permute.xlu0 0
    %63 = vperm.xlu0 %62, %v45
    %v64 = vpop.permute.xlu0 %63
    %v66 = vsub.f32 %v26, %v59
    %v67 = vsub.f32 %v27, %v64
    %v68 = vmul.f32 %v66, 1.442695
    %v69 = vpow.pop %v68
    %v70 = vmul.f32 %v67, 1.442695
    %v71 = vpow.pop %v70
    %v72 = vsel %vm37, %v69, 0.0
    %73 = vadd.xlane.f32.xlu0 %v72
    %v74 = vpop.xlane.xlu0 %73
    %v75 = vsel %vm37, %v71, 0.0
    %76 = vadd.xlane.f32.xlu0 %v75
    %v77 = vpop.xlane.xlu0 %76
    %v78 = vadd.f32 %v54, %v74
    %v79 = vadd.f32 %v55, %v77
    %vm80 = vcmask 7168
    %81 = vst.msk [vmem:[#allocation3] sm:$0xff] %vm80, %v78
    %82 = vst.msk [vmem:[#allocation3 + $0x8] sm:$0xff] %vm80, %v79
    %83 = vst.msk [vmem:[#allocation2] sm:$0xff] %vm80, %v44
    %84 = vst.msk [vmem:[#allocation2 + $0x8] sm:$0xff] %vm80, %v45
    %v85 = vld [vmem:[#allocation4] sm:$0xff]
    %v86 = vld [vmem:[#allocation4 + $0x8] sm:$0xff]
    %87 = vset.pattern.permute.xlu0 0
    %88 = vperm.xlu0 %87, %v28
    %v89 = vpop.permute.xlu0 %88
    %90 = vset.pattern.permute.xlu0 0
    %91 = vperm.xlu0 %90, %v29
    %v92 = vpop.permute.xlu0 %91
    %vm93 = vcmp.eq.s32.totalorder %v34, %v89
    %vm94 = vcmp.eq.s32.totalorder %v34, %v92
    %v95 = vsel %vm93, %v26, 0.0
    %v96 = vsel %vm94, %v27, 0.0
    %v97 = vsel %vm37, %v95, 0.0
    %98 = vadd.xlane.f32.xlu0 %v97
    %v99 = vpop.xlane.xlu0 %98
    %v100 = vsel %vm37, %v96, 0.0
    %101 = vadd.xlane.f32.xlu0 %v100
    %v102 = vpop.xlane.xlu0 %101
    %v103 = vadd.f32 %v85, %v99
    %v104 = vadd.f32 %v86, %v102
    %105 = vst.msk [vmem:[#allocation4] sm:$0xff] %vm80, %v103
    %106 = vst.msk [vmem:[#allocation4 + $0x8] sm:$0xff] %vm80, %v104
    // Predicated region
    $region14: #{tpu_custom_call.1} parent=1 // pred_check
      %p107 = pneg %p15
    $region15: #{tpu_custom_call.1} parent=1 // pred_check_branch
      %109 = sbr.rel (%p107) target = $region17
    $region16: #{tpu_custom_call.1} parent=1 // pred_region
      %v110 = vld [vmem:[#allocation3] sm:$0xff]
      %v111 = vld [vmem:[#allocation3 + $0x8] sm:$0xff]
      %v112 = vlog2.pop %v110
      %v113 = vmul.f32 %v112, 0.6931472
      %v114 = vlog2.pop %v111
      %v115 = vmul.f32 %v114, 0.6931472
      %v116 = vld [vmem:[#allocation2] sm:$0xff]
      %v117 = vld [vmem:[#allocation2 + $0x8] sm:$0xff]
      %v118 = vadd.f32 %v113, %v116
      %v119 = vadd.f32 %v115, %v117
      %vm120 = vcmp.ge.s32.totalorder %v28, 0
      %vm121 = vcmp.ge.s32.totalorder %v29, 0
      %vm122 = vcmp.lt.s32.totalorder %v28, 32
      %vm123 = vcmp.lt.s32.totalorder %v29, 32
      %vm124 = vmand %vm120, %vm122
      %vm125 = vmand %vm121, %vm123
      %v126 = vsel %vm124, 1.0, 0.0
      %v127 = vsel %vm125, 1.0, 0.0
      %v128 = vld [vmem:[#allocation4] sm:$0xff]
      %v129 = vld [vmem:[#allocation4 + $0x8] sm:$0xff]
      %v130 = vsub.f32 %v118, %v128
      %v131 = vsub.f32 %v119, %v129
      %v132 = vsel %vm124, %v130, 0.0
      %v133 = vsel %vm125, %v131, 0.0
      %v134 = vmul.f32 %v132, %v126
      %v135 = vmul.f32 %v133, %v127
      %v136 = vsel %vm80, %v134, 0.0
      %v137 = vsel %vm80, %v135, 0.0
      %v138 = vadd.f32 %v136, %v137
      %139 = vadd.xlane.f32.xlu0 %v138
      %v140 = vpop.xlane.xlu0 %139
      %v141 = vrot.slane %v140, 4
      %v142 = vadd.f32 %v140, %v141
      %v143 = vrot.slane %v142, 2
      %v144 = vadd.f32 %v142, %v143
      %v145 = vrot.slane %v144, 1
      %v146 = vadd.f32 %v144, %v145
      %s147 = vtos %v146
      %v148 = vstv %s147
      %149 = vst [vmem:[#allocation5] sm:$0xff] %v148
      %v150 = vsel %vm80, %v126, 0.0
      %v151 = vsel %vm80, %v127, 0.0
      %v152 = vadd.f32 %v150, %v151
      %153 = vadd.xlane.f32.xlu0 %v152
      %v154 = vpop.xlane.xlu0 %153
      %v155 = vrot.slane %v154, 4
      %v156 = vadd.f32 %v154, %v155
      %v157 = vrot.slane %v156, 2
      %v158 = vadd.f32 %v156, %v157
      %v159 = vrot.slane %v158, 1
      %v160 = vadd.f32 %v158, %v159
      %s161 = vtos %v160
      %v162 = vstv %s161
      %163 = vst [vmem:[#allocation7] sm:$0xff] %v162
    $region17: #{tpu_custom_call.1} parent=1 // pred_fallthru
      _
    // Predicated region
    $region18: #{tpu_custom_call.1} parent=1 // pred_check
      _
    $region19: #{tpu_custom_call.1} parent=1 // pred_check_branch
      %165 = sbr.rel (0) target = $region21
    $region20: #{tpu_custom_call.1} parent=1 // pred_region
      %167 = vsyncadd [#allocation6], 0
      %s169 = sshll.u32 [#allocation5], 4
      %s170 = int_to_ptr.vmem [resolvable:$true] %s169
      %s171 = sshll.u32 %s2, 4
      %s172 = int_to_ptr.hbm [resolvable:$true] %s171
      %174 = dma.vmem_to_hbm [thread:$0]  %s170, 128, %s172, [#allocation6]
    $region21: #{tpu_custom_call.1} parent=1 // pred_fallthru
      _
    // Predicated region
    $region22: #{tpu_custom_call.1} parent=1 // pred_check
      _
    $region23: #{tpu_custom_call.1} parent=1 // pred_check_branch
      %176 = sbr.rel (0) target = $region25
    $region24: #{tpu_custom_call.1} parent=1 // pred_region
      %178 = vsyncadd [#allocation8], 0
      %s180 = sshll.u32 [#allocation7], 4
      %s181 = int_to_ptr.vmem [resolvable:$true] %s180
      %s182 = sshll.u32 %s3, 4
      %s183 = int_to_ptr.hbm [resolvable:$true] %s182
      %185 = dma.vmem_to_hbm [thread:$0]  %s181, 128, %s183, [#allocation8]
    $region25: #{tpu_custom_call.1} parent=1 // pred_fallthru
      _
    // Predicated region
    $region26: #{tpu_custom_call.1} parent=1 // pred_check
      _
    $region27: #{tpu_custom_call.1} parent=1 // pred_check_branch
      %187 = sbr.rel (0) target = $region29
    $region28: #{tpu_custom_call.1} parent=1 // pred_region
      %189 = dma.done [#allocation6], 128
    $region29: #{tpu_custom_call.1} parent=1 // pred_fallthru
      _
    // Predicated region
    $region30: #{tpu_custom_call.1} parent=1 // pred_check
      _
    $region31: #{tpu_custom_call.1} parent=1 // pred_check_branch
      %191 = sbr.rel (0) target = $region33
    $region32: #{tpu_custom_call.1} parent=1 // pred_region
      %193 = dma.done [#allocation8], 128
    $region33: #{tpu_custom_call.1} parent=1 // pred_fallthru
      _
    %194 = vsyncpa [#allocation6], 1
    %195 = vsyncpa [#allocation8], 1

</llo_original>
